<compile_context>
chip_gen: v7x
topology: tpu7x:2x2x1
jax: 0.10.0
libtpu: 0.0.40
codegen_flags: <defaults>
</compile_context>

<pallas_src>
import functools

import jax
import jax.numpy as jnp
from jax.experimental import pallas as pl
from jax.experimental.pallas import tpu as pltpu


def _round_up(x, m):
    return ((x + m - 1) // m) * m


def _choose_batch_tile(B, core_parallel):
    """Sublane/MXU aligned batch tile with bounded (<~12%) row padding."""
    if core_parallel and 32 <= B <= 512:
        # Guarantee >=2 grid steps so v7x's two TensorCores both get work.
        return _round_up(pl.cdiv(B, 2), 16)
    if B <= 512:
        return _round_up(max(B, 16), 16)          # single 16-aligned tile
    for tb in (1024, 512, 256):                   # prefer big, MXU-M aligned tiles
        n_blocks = _round_up(B, tb) // tb
        if core_parallel and n_blocks < 2:
            continue
        if _round_up(B, tb) - B <= B // 8:        # <= 12.5% padded rows
            return tb
    return 256


def _concept_kernel(s_ref, w1_ref, b1_ref, w2_ref, b2_ref, w3_ref, b3_ref,
                    logps_ref):
    bf16 = jnp.bfloat16
    # In-kernel f32 -> bf16 cast (VPU): avoids a separate wrapper HBM cast pass.
    s = s_ref[...].astype(bf16)                                   # (TB, s_dim)

    # ---- MLP hot path: 3 MXU matmuls (bf16 in, f32 acc) + ReLU on the VPU ----
    h1 = jnp.dot(s, w1_ref[...], preferred_element_type=jnp.float32) + b1_ref[...]
    h1 = jnp.maximum(h1, 0.0)
    h2 = jnp.dot(h1.astype(bf16), w2_ref[...],
                 preferred_element_type=jnp.float32) + b2_ref[...]
    h2 = jnp.maximum(h2, 0.0)
    logits = jnp.dot(h2.astype(bf16), w3_ref[...],
                     preferred_element_type=jnp.float32) + b3_ref[...]   # (TB, NP)

    # ---- numerically stable log-softmax along the lane axis ----
    # Padded concept columns carry f32 bias -1e30 -> exp() contributes ~0 and the
    # max comes from real columns; the wrapper slices the pad off.
    m = jnp.max(logits, axis=-1, keepdims=True)
    z = logits - m
    sum_e = jnp.sum(jnp.exp(z), axis=-1, keepdims=True)
    logps_ref[...] = z - jnp.log(sum_e)          # single f32 output (PS = exp later)


def prepare_concept_net_params(w1, b1, w2, b2, w3, b3):
    """One-time preprocessing, hoisted out of the per-call path:
    pad n_concepts -> lane-dense multiple of 128, cast weights to bf16."""
    hidden = w1.shape[1]
    n_concepts = w3.shape[1]
    NP = _round_up(n_concepts, 128)
    bf16 = jnp.bfloat16

    w3p = jnp.zeros((hidden, NP), jnp.float32).at[:, :n_concepts].set(w3)
    # Pad bias stays f32 (-1e30); never cast it to bf16.
    b3p = jnp.full((1, NP), -1e30, jnp.float32).at[:, :n_concepts].set(
        jnp.asarray(b3, jnp.float32).reshape(1, -1))

    params = (
        w1.astype(bf16), jnp.asarray(b1, jnp.float32).reshape(1, -1),
        w2.astype(bf16), jnp.asarray(b2, jnp.float32).reshape(1, -1),
        w3p.astype(bf16), b3p,
    )
    return params, n_concepts


@functools.partial(jax.jit, static_argnames=("n_concepts", "core_parallel"))
def _concept_net_forward(s, w1b, b1, w2b, b2, w3b, b3p, *, n_concepts,
                         core_parallel):
    B, s_dim = s.shape
    hidden = w1b.shape[1]
    NP = w3b.shape[1]

    TB = _choose_batch_tile(B, core_parallel)
    B_pad = _round_up(B, TB)
    s_p = s if B_pad == B else jnp.pad(s, ((0, B_pad - B), (0, 0)))
    n_blocks = B_pad // TB

    def resident(shape):
        # Constant index_map + single buffer: DMA'd once, stays VMEM-resident,
        # no wasted second prefetch copy.
        return pl.BlockSpec(shape, lambda i: (0, 0), pipeline_mode=pl.Buffered(1))

    dim_sem = pltpu.CORE_PARALLEL if core_parallel else pltpu.PARALLEL

    log_ps_pad = pl.pallas_call(
        _concept_kernel,
        out_shape=jax.ShapeDtypeStruct((B_pad, NP), jnp.float32),
        grid=(n_blocks,),
        in_specs=[
            pl.BlockSpec((TB, s_dim), lambda i: (i, 0)),     # batch-tiled input (f32)
            resident((s_dim, hidden)), resident((1, hidden)),
            resident((hidden, hidden)), resident((1, hidden)),
            resident((hidden, NP)), resident((1, NP)),
        ],
        out_specs=pl.BlockSpec((TB, NP), lambda i: (i, 0)),  # single lane-dense out
        compiler_params=pltpu.CompilerParams(dimension_semantics=(dim_sem,)),
    )(s_p, w1b, b1, w2b, b2, w3b, b3p)

    log_ps = log_ps_pad[:B, :n_concepts]
    ps = jnp.exp(log_ps)   # PS_s = exp(log_PS_s); done on the tiny sliced result
    return ps, log_ps


def concept_net_forward(s, prepared_params, n_concepts, *, core_parallel=False):
    """Returns (PS_s, log_PS_s), each (B, n_concepts) float32."""
    return _concept_net_forward(s, *prepared_params, n_concepts=n_concepts,
                                core_parallel=core_parallel)


def _init_linear(key, in_dim, out_dim):
    # PyTorch nn.Linear default init: U(-1/sqrt(fan_in), 1/sqrt(fan_in)).
    kw, kb = jax.random.split(key)
    bound = 1.0 / jnp.sqrt(jnp.float32(in_dim))
    w = jax.random.uniform(kw, (in_dim, out_dim), jnp.float32, -bound, bound)
    b = jax.random.uniform(kb, (1, out_dim), jnp.float32, -bound, bound)
    return w, b


def _reference(s, w1, b1, w2, b2, w3, b3):
    # Pure-JAX reference using the SAME bf16 weight/activation quantization.
    bf16 = jnp.bfloat16
    h1 = jnp.maximum(jnp.dot(s.astype(bf16), w1.astype(bf16),
                             preferred_element_type=jnp.float32) + b1, 0.0)
    h2 = jnp.maximum(jnp.dot(h1.astype(bf16), w2.astype(bf16),
                             preferred_element_type=jnp.float32) + b2, 0.0)
    logits = jnp.dot(h2.astype(bf16), w3.astype(bf16),
                     preferred_element_type=jnp.float32) + b3
    return jax.nn.softmax(logits, axis=1), jax.nn.log_softmax(logits, axis=1)


if __name__ == "__main__":
    # Small shapes consistent with the module.
    B, S_DIM, HIDDEN, N_CONCEPTS = 8, 32, 256, 10

    key = jax.random.PRNGKey(0)
    k_s, k1, k2, k3, k_s2 = jax.random.split(key, 5)

    s = jax.random.normal(k_s, (B, S_DIM), jnp.float32)
    w1, b1 = _init_linear(k1, S_DIM, HIDDEN)
    w2, b2 = _init_linear(k2, HIDDEN, HIDDEN)
    w3, b3 = _init_linear(k3, HIDDEN, N_CONCEPTS)

    params, n_concepts = prepare_concept_net_params(w1, b1, w2, b2, w3, b3)

    ps, log_ps = concept_net_forward(s, params, n_concepts)
    jax.block_until_ready((ps, log_ps))

    ps_ref, log_ps_ref = _reference(s, w1, b1, w2, b2, w3, b3)
    assert ps.shape == (B, N_CONCEPTS) and log_ps.shape == (B, N_CONCEPTS)
    assert jnp.allclose(ps, ps_ref, atol=2e-3), "PS_s mismatch"
    assert jnp.allclose(log_ps, log_ps_ref, atol=2e-3), "log_PS_s mismatch"
    assert jnp.allclose(jnp.sum(ps, axis=1), 1.0, atol=1e-4)
    assert bool(jnp.all(jnp.isfinite(log_ps)))

    # Multi-tile path (grid > 1, adaptive TB, bounded row padding).
    B2 = 600
    s2 = jax.random.normal(k_s2, (B2, S_DIM), jnp.float32)
    ps2, log_ps2 = concept_net_forward(s2, params, n_concepts)
    jax.block_until_ready((ps2, log_ps2))
    ps2_ref, log_ps2_ref = _reference(s2, w1, b1, w2, b2, w3, b3)
    assert ps2.shape == (B2, N_CONCEPTS) and log_ps2.shape == (B2, N_CONCEPTS)
    assert jnp.allclose(ps2, ps2_ref, atol=2e-3), "PS_s mismatch (tiled)"
    assert jnp.allclose(log_ps2, log_ps2_ref, atol=2e-3), "log_PS_s mismatch (tiled)"

    print("KERNEL_OK")
</pallas_src>

<mosaic_0001>
module attributes {stable_mosaic.version = 11 : i64} {
  func.func @_concept_kernel(%arg0: i32, %arg1: memref<16x32xf32, #tpu.memory_space<vmem>>, %arg2: memref<32x256xbf16, #tpu.memory_space<vmem>>, %arg3: memref<1x256xf32, #tpu.memory_space<vmem>>, %arg4: memref<256x256xbf16, #tpu.memory_space<vmem>>, %arg5: memref<1x256xf32, #tpu.memory_space<vmem>>, %arg6: memref<256x128xbf16, #tpu.memory_space<vmem>>, %arg7: memref<1x128xf32, #tpu.memory_space<vmem>>, %arg8: memref<16x128xf32, #tpu.memory_space<vmem>>) attributes {dimension_semantics = [#tpu.dimension_semantics<parallel>], iteration_bounds = array<i64: 1>, scalar_prefetch = 0 : i64, scratch_operands = 0 : i64, tpu.core_type = #tpu.core_type<tc>, window_params = [{transform_indices = @transform_0, window_bounds = array<i64: 16, 32>}, {pipeline_mode = #tpu.pipeline_mode<synchronous>, transform_indices = @transform_1, window_bounds = array<i64: 32, 256>}, {pipeline_mode = #tpu.pipeline_mode<synchronous>, transform_indices = @transform_2, window_bounds = array<i64: 1, 256>}, {pipeline_mode = #tpu.pipeline_mode<synchronous>, transform_indices = @transform_3, window_bounds = array<i64: 256, 256>}, {pipeline_mode = #tpu.pipeline_mode<synchronous>, transform_indices = @transform_4, window_bounds = array<i64: 1, 256>}, {pipeline_mode = #tpu.pipeline_mode<synchronous>, transform_indices = @transform_5, window_bounds = array<i64: 256, 128>}, {pipeline_mode = #tpu.pipeline_mode<synchronous>, transform_indices = @transform_6, window_bounds = array<i64: 1, 128>}, {transform_indices = @transform_7, window_bounds = array<i64: 16, 128>}]} {
    %c0 = arith.constant 0 : index
    %c0_0 = arith.constant 0 : index
    %0 = vector.load %arg1[%c0, %c0_0] : memref<16x32xf32, #tpu.memory_space<vmem>>, vector<16x32xf32>
    %1 = arith.truncf %0 : vector<16x32xf32> to vector<16x32xbf16>
    %c0_1 = arith.constant 0 : index
    %c0_2 = arith.constant 0 : index
    %2 = vector.load %arg2[%c0_1, %c0_2] : memref<32x256xbf16, #tpu.memory_space<vmem>>, vector<32x256xbf16>
    %cst = arith.constant dense<0.000000e+00> : vector<16x256xf32>
    %3 = tpu.matmul %1, %2, %cst {dimension_numbers = #tpu.dot_dimension_numbers<[1], [0], [0], [1], [0, 0, 1, 1], [], []>} : vector<16x32xbf16>, vector<32x256xbf16>, vector<16x256xf32> -> vector<16x256xf32>
    %c0_3 = arith.constant 0 : index
    %c0_4 = arith.constant 0 : index
    %4 = vector.load %arg3[%c0_3, %c0_4] : memref<1x256xf32, #tpu.memory_space<vmem>>, vector<1x256xf32>
    %5 = vector.broadcast %4 : vector<1x256xf32> to vector<16x256xf32>
    %6 = arith.addf %3, %5 : vector<16x256xf32>
    %cst_5 = arith.constant 0.000000e+00 : f32
    %7 = vector.broadcast %cst_5 : f32 to vector<16x256xf32>
    %8 = arith.maximumf %6, %7 : vector<16x256xf32>
    %9 = arith.truncf %8 : vector<16x256xf32> to vector<16x256xbf16>
    %c0_6 = arith.constant 0 : index
    %c0_7 = arith.constant 0 : index
    %10 = vector.load %arg4[%c0_6, %c0_7] : memref<256x256xbf16, #tpu.memory_space<vmem>>, vector<256x256xbf16>
    %cst_8 = arith.constant dense<0.000000e+00> : vector<16x256xf32>
    %11 = tpu.matmul %9, %10, %cst_8 {dimension_numbers = #tpu.dot_dimension_numbers<[1], [0], [0], [1], [0, 0, 1, 1], [], []>} : vector<16x256xbf16>, vector<256x256xbf16>, vector<16x256xf32> -> vector<16x256xf32>
    %c0_9 = arith.constant 0 : index
    %c0_10 = arith.constant 0 : index
    %12 = vector.load %arg5[%c0_9, %c0_10] : memref<1x256xf32, #tpu.memory_space<vmem>>, vector<1x256xf32>
    %13 = vector.broadcast %12 : vector<1x256xf32> to vector<16x256xf32>
    %14 = arith.addf %11, %13 : vector<16x256xf32>
    %cst_11 = arith.constant 0.000000e+00 : f32
    %15 = vector.broadcast %cst_11 : f32 to vector<16x256xf32>
    %16 = arith.maximumf %14, %15 : vector<16x256xf32>
    %17 = arith.truncf %16 : vector<16x256xf32> to vector<16x256xbf16>
    %c0_12 = arith.constant 0 : index
    %c0_13 = arith.constant 0 : index
    %18 = vector.load %arg6[%c0_12, %c0_13] : memref<256x128xbf16, #tpu.memory_space<vmem>>, vector<256x128xbf16>
    %cst_14 = arith.constant dense<0.000000e+00> : vector<16x128xf32>
    %19 = tpu.matmul %17, %18, %cst_14 {dimension_numbers = #tpu.dot_dimension_numbers<[1], [0], [0], [1], [0, 0, 1, 1], [], []>} : vector<16x256xbf16>, vector<256x128xbf16>, vector<16x128xf32> -> vector<16x128xf32>
    %c0_15 = arith.constant 0 : index
    %c0_16 = arith.constant 0 : index
    %20 = vector.load %arg7[%c0_15, %c0_16] : memref<1x128xf32, #tpu.memory_space<vmem>>, vector<1x128xf32>
    %21 = vector.broadcast %20 : vector<1x128xf32> to vector<16x128xf32>
    %22 = arith.addf %19, %21 : vector<16x128xf32>
    %cst_17 = arith.constant dense<0xFF800000> : vector<16xf32>
    %23 = vector.multi_reduction <maximumf>, %22, %cst_17 [1] : vector<16x128xf32> to vector<16xf32>
    %24 = vector.shape_cast %23 : vector<16xf32> to vector<16x1xf32>
    %25 = vector.broadcast %24 : vector<16x1xf32> to vector<16x128xf32>
    %26 = arith.subf %22, %25 : vector<16x128xf32>
    %27 = math.exp %26 : vector<16x128xf32>
    %cst_18 = arith.constant dense<0.000000e+00> : vector<16xf32>
    %28 = vector.multi_reduction <add>, %27, %cst_18 [1] : vector<16x128xf32> to vector<16xf32>
    %29 = vector.shape_cast %28 : vector<16xf32> to vector<16x1xf32>
    %30 = math.log %29 : vector<16x1xf32>
    %31 = vector.broadcast %30 : vector<16x1xf32> to vector<16x128xf32>
    %32 = arith.subf %26, %31 : vector<16x128xf32>
    %c0_19 = arith.constant 0 : index
    %c0_20 = arith.constant 0 : index
    %33 = vector.load %arg8[%c0_19, %c0_20] : memref<16x128xf32, #tpu.memory_space<vmem>>, vector<16x128xf32>
    tpu.vector_store %arg8[%c0_19, %c0_20], %32 {strides = array<i32>} : memref<16x128xf32, #tpu.memory_space<vmem>>, vector<16x128xf32>,
    return
  }
  func.func @transform_0(%arg0: i32) -> (i32, i32) {
    %c0_i32 = arith.constant 0 : i32
    %c0_i32_0 = arith.constant 0 : i32
    return %arg0, %c0_i32 : i32, i32
  }
  func.func @transform_1(%arg0: i32) -> (i32, i32) {
    %c0_i32 = arith.constant 0 : i32
    %c0_i32_0 = arith.constant 0 : i32
    %c0_i32_1 = arith.constant 0 : i32
    return %c0_i32, %c0_i32_0 : i32, i32
  }
  func.func @transform_2(%arg0: i32) -> (i32, i32) {
    %c0_i32 = arith.constant 0 : i32
    %c0_i32_0 = arith.constant 0 : i32
    %c0_i32_1 = arith.constant 0 : i32
    return %c0_i32, %c0_i32_0 : i32, i32
  }
  func.func @transform_3(%arg0: i32) -> (i32, i32) {
    %c0_i32 = arith.constant 0 : i32
    %c0_i32_0 = arith.constant 0 : i32
    %c0_i32_1 = arith.constant 0 : i32
    return %c0_i32, %c0_i32_0 : i32, i32
  }
  func.func @transform_4(%arg0: i32) -> (i32, i32) {
    %c0_i32 = arith.constant 0 : i32
    %c0_i32_0 = arith.constant 0 : i32
    %c0_i32_1 = arith.constant 0 : i32
    return %c0_i32, %c0_i32_0 : i32, i32
  }
  func.func @transform_5(%arg0: i32) -> (i32, i32) {
    %c0_i32 = arith.constant 0 : i32
    %c0_i32_0 = arith.constant 0 : i32
    %c0_i32_1 = arith.constant 0 : i32
    return %c0_i32, %c0_i32_0 : i32, i32
  }
  func.func @transform_6(%arg0: i32) -> (i32, i32) {
    %c0_i32 = arith.constant 0 : i32
    %c0_i32_0 = arith.constant 0 : i32
    %c0_i32_1 = arith.constant 0 : i32
    return %c0_i32, %c0_i32_0 : i32, i32
  }
  func.func @transform_7(%arg0: i32) -> (i32, i32) {
    %c0_i32 = arith.constant 0 : i32
    %c0_i32_0 = arith.constant 0 : i32
    return %arg0, %c0_i32 : i32, i32
  }
}

</mosaic_0001>

<llo_original>
// kernel: _concept_net_forward.1
$region0: #{_concept_net_forward.1}
  #allocation0 [shape = 'u32[]', space=smem, size = 0x4, offset = 0x4, fixed_abs, tag = 'smem constant byte address 0x4 - core index']
  #allocation1 [shape = 'u32[144,128]{1,0:T(1,128)}', space=vmem, size = 0x12000, scoped, tag = 'internal scratch']
  %s0 = inlined_call_operand.vmem [shape: f32[16,32], index: 0, kind: input, shape index: {}]
  %s1 = inlined_call_operand.hbm [shape: bf16[32,256], index: 1, kind: input, shape index: {}]
  %s2 = inlined_call_operand.vmem [shape: f32[1,256], index: 2, kind: input, shape index: {}]
  %s3 = inlined_call_operand.hbm [shape: bf16[256,256], index: 3, kind: input, shape index: {}]
  %s4 = inlined_call_operand.vmem [shape: f32[1,256], index: 4, kind: input, shape index: {}]
  %s5 = inlined_call_operand.hbm [shape: bf16[256,128], index: 5, kind: input, shape index: {}]
  %s6 = inlined_call_operand.vmem [shape: f32[1,128], index: 6, kind: input, shape index: {}]
  %s7 = inlined_call_operand.vmem [shape: f32[16,128], index: 7, kind: output, shape index: {}]
  %s8 = sld [smem:[#allocation0]]
  $region50: #{_concept_net_forward.1} parent=0
    _
  %s10 = ssub.s32 1, %s8
  %s11 = scalar_select 0, %s10, %s8
  $region1: #{_concept_net_forward.1} parent=0
    #allocation2 [shape = 'u8[16384]{0}', space=vmem, size = 0x4000, scoped, tag = 'input window, operand 1, single buffered']
    #allocation3 [shape = 's32[1]{0}', space=sflag, size = 0x4, scoped, tag = 'scoped memory for _concept_net_forward.1']
    #allocation4 [shape = 'u8[131072]{0}', space=vmem, size = 0x20000, scoped, tag = 'input window, operand 3, single buffered']
    #allocation5 [shape = 's32[1]{0}', space=sflag, size = 0x4, scoped, tag = 'scoped memory for _concept_net_forward.1']
    #allocation6 [shape = 'u8[65536]{0}', space=vmem, size = 0x10000, scoped, tag = 'input window, operand 5, single buffered']
    %12 = vsyncpa [#allocation3], 0
    %13 = vsyncpa [#allocation5], 0
    // Predicated region
    $region2: #{_concept_net_forward.1} parent=1 // pred_check
      _
    $region3: #{_concept_net_forward.1} parent=1 // pred_check_branch
      %15 = sbr.rel (0) target = $region5
    $region4: #{_concept_net_forward.1} parent=1 // pred_region
      _
    $region5: #{_concept_net_forward.1} parent=1 // pred_fallthru
      _
    // Predicated region
    $region6: #{_concept_net_forward.1} parent=1 // pred_check
      _
    $region7: #{_concept_net_forward.1} parent=1 // pred_check_branch
      %17 = sbr.rel (0) target = $region9
    $region8: #{_concept_net_forward.1} parent=1 // pred_region
      %s19 = ssub.s32 512, 512
      %20 = vsyncadd [#allocation3], %s19
      %s21 = sshll.u32 [#allocation2], 4
      %s22 = int_to_ptr.vmem [resolvable:$true] %s21
      %27 = dma.hbm_to_vmem [thread:$0]  %s1, 512, %s22, [#allocation3], 128, 128, 8
    $region9: #{_concept_net_forward.1} parent=1 // pred_fallthru
      _
    // Predicated region
    $region10: #{_concept_net_forward.1} parent=1 // pred_check
      _
    $region11: #{_concept_net_forward.1} parent=1 // pred_check_branch
      %29 = sbr.rel (0) target = $region13
    $region12: #{_concept_net_forward.1} parent=1 // pred_region
      _
    $region13: #{_concept_net_forward.1} parent=1 // pred_fallthru
      _
    // Predicated region
    $region14: #{_concept_net_forward.1} parent=1 // pred_check
      _
    $region15: #{_concept_net_forward.1} parent=1 // pred_check_branch
      %31 = sbr.rel (0) target = $region17
    $region16: #{_concept_net_forward.1} parent=1 // pred_region
      %s33 = ssub.s32 4096, 4096
      %34 = vsyncadd [#allocation5], %s33
      %s35 = sshll.u32 [#allocation4], 4
      %s36 = int_to_ptr.vmem [resolvable:$true] %s35
      %41 = dma.hbm_to_vmem [thread:$0]  %s3, 4096, %s36, [#allocation5], 128, 128, 8
    $region17: #{_concept_net_forward.1} parent=1 // pred_fallthru
      _
    // Predicated region
    $region18: #{_concept_net_forward.1} parent=1 // pred_check
      _
    $region19: #{_concept_net_forward.1} parent=1 // pred_check_branch
      %43 = sbr.rel (0) target = $region21
    $region20: #{_concept_net_forward.1} parent=1 // pred_region
      _
    $region21: #{_concept_net_forward.1} parent=1 // pred_fallthru
      _
    // Predicated region
    $region22: #{_concept_net_forward.1} parent=1 // pred_check
      _
    $region23: #{_concept_net_forward.1} parent=1 // pred_check_branch
      %45 = sbr.rel (0) target = $region25
    $region24: #{_concept_net_forward.1} parent=1 // pred_region
      %s47 = ssub.s32 2048, 2048
      %48 = vsyncadd [#allocation5], %s47
      %s49 = sshll.u32 [#allocation6], 4
      %s50 = int_to_ptr.vmem [resolvable:$true] %s49
      %55 = dma.hbm_to_vmem [thread:$0]  %s5, 2048, %s50, [#allocation5], 64, 64, 4
    $region25: #{_concept_net_forward.1} parent=1 // pred_fallthru
      _
    // Predicated region
    $region26: #{_concept_net_forward.1} parent=1 // pred_check
      _
    $region27: #{_concept_net_forward.1} parent=1 // pred_check_branch
      %57 = sbr.rel (0) target = $region29
    $region28: #{_concept_net_forward.1} parent=1 // pred_region
      _
    $region29: #{_concept_net_forward.1} parent=1 // pred_fallthru
      _
    // Predicated region
    $region30: #{_concept_net_forward.1} parent=1 // pred_check
      _
    $region31: #{_concept_net_forward.1} parent=1 // pred_check_branch
      %59 = sbr.rel (0) target = $region33
    $region32: #{_concept_net_forward.1} parent=1 // pred_region
      %60 = dma.done [#allocation3], 512
    $region33: #{_concept_net_forward.1} parent=1 // pred_fallthru
      _
    // Predicated region
    $region34: #{_concept_net_forward.1} parent=1 // pred_check
      _
    $region35: #{_concept_net_forward.1} parent=1 // pred_check_branch
      %62 = sbr.rel (0) target = $region37
    $region36: #{_concept_net_forward.1} parent=1 // pred_region
      %63 = dma.done [#allocation5], 4096
    $region37: #{_concept_net_forward.1} parent=1 // pred_fallthru
      _
    // Predicated region
    $region38: #{_concept_net_forward.1} parent=1 // pred_check
      _
    $region39: #{_concept_net_forward.1} parent=1 // pred_check_branch
      %65 = sbr.rel (0) target = $region41
    $region40: #{_concept_net_forward.1} parent=1 // pred_region
      %66 = dma.done [#allocation5], 2048
    $region41: #{_concept_net_forward.1} parent=1 // pred_fallthru
      _
    %v68 = vld [vmem:[%s0] sm:$0xff]
    %v69 = vld [vmem:[%s0 + $0x8] sm:$0xff]
    %v70 = vpack.c.bf16 %v69, %v68
    %v71 = vld [vmem:[#allocation2] sm:$0xff]
    %v72 = vld [vmem:[#allocation2 + $0x8] sm:$0xff]
    %v73 = vld [vmem:[#allocation2 + $0x10] sm:$0xff]
    %v74 = vld [vmem:[#allocation2 + $0x18] sm:$0xff]
    %v75 = vld [vmem:[%s2] sm:$0x3]
    %v77 = vlaneseq
    %v78 = vshrl.u32 %v77, 7
    %v79 = vsub.s32 0, %v78
    %v80 = vrot.slane %v75, %v79
    %v81 = vlaneseq
    %v82 = vshrl.u32 %v81, 7
    %v83 = vsub.s32 1, %v82
    %v84 = vrot.slane %v75, %v83
    %v91 = vunpack.c.l.b16 %v71
    %v92 = vunpack.c.h.b16 %v71
    %v93 = vunpack.c.l.b16 %v72
    %v94 = vunpack.c.h.b16 %v72
    %v95 = vunpack.c.l.b16 %v73
    %v96 = vunpack.c.h.b16 %v73
    %v97 = vunpack.c.l.b16 %v74
    %v98 = vunpack.c.h.b16 %v74
    %v99 = vpack.c.b16 %v93, %v91
    %v100 = vpack.c.b16 %v94, %v92
    %v101 = vpack.c.b16 %v97, %v95
    %v102 = vpack.c.b16 %v98, %v96
    %vm107 = vcmask 261120
    %v109 = vsel %vm107, %v70, 0
    %111 = vmatprep.subr.bf16.mxu0 %v100
    %112 = vmatpush1.bf16.msra.mxu0 %v99
    %113 = vmatprep.subr.bf16.mxu0 %v102
    %114 = vmatpush1.bf16.msra.mxu0 %v101
    %115 = vmatprep.subr.bf16.mxu0 0
    %116 = vmatpush1.bf16.msra.mxu0 0
    %117 = vmatprep.subr.bf16.mxu0 0
    %118 = vmatpush1.bf16.msra.mxu0 0
    %119 = vmatprep.subr.bf16.mxu0 0
    %120 = vmatpush1.bf16.msra.mxu0 0
    %121 = vmatprep.subr.bf16.mxu0 0
    %122 = vmatpush1.bf16.msra.mxu0 0
    %123 = vmatprep.subr.bf16.mxu0 0
    %124 = vmatpush1.bf16.msra.mxu0 0
    %125 = vmatprep.subr.bf16.mxu0 0
    %126 = vmatpush1.bf16.msra.mxu0 0
    %127 = vmatprep.subr.bf16.mxu0 0
    %128 = vmatpush1.bf16.msra.mxu0 0
    %129 = vmatprep.subr.bf16.mxu0 0
    %130 = vmatpush1.bf16.msra.mxu0 0
    %131 = vmatprep.subr.bf16.mxu0 0
    %132 = vmatpush1.bf16.msra.mxu0 0
    %133 = vmatprep.subr.bf16.mxu0 0
    %134 = vmatpush1.bf16.msra.mxu0 0
    %135 = vmatprep.subr.bf16.mxu0 0
    %136 = vmatpush1.bf16.msra.mxu0 0
    %137 = vmatprep.subr.bf16.mxu0 0
    %138 = vmatpush1.bf16.msra.mxu0 0
    %139 = vmatprep.subr.bf16.mxu0 0
    %140 = vmatpush1.bf16.msra.mxu0 0
    %141 = vmatprep.subr.bf16.mxu0 0
    %142 = vmatpush1.bf16.msra.mxu0 0
    %143 = vmatprep.mubr.bf16.mxu0 0
    %144 = vmatmul.mubr.bf16.gmra.mrb[0].mxu0 %v109
    %v145 = vpop.f32.mrb[0].mxu0
    %v146 = vadd.f32 %v80, %v145
    %v147 = vpop.f32.mrb[0].mxu0
    %v148 = vadd.f32 %v84, %v147
    %v149 = vpop.f32.mrb[0].mxu0
    %v150 = vadd.f32 %v80, %v149
    %v151 = vpop.f32.mrb[0].mxu0
    %v152 = vadd.f32 %v84, %v151
    %153 = vdwg.mxu0
    %v154 = vmax.f32 %v146, 0.0
    %v155 = vmax.f32 %v148, 0.0
    %v156 = vmax.f32 %v150, 0.0
    %v157 = vmax.f32 %v152, 0.0
    %v158 = vpack.c.bf16 %v156, %v154
    %v159 = vpack.c.bf16 %v157, %v155
    %v160 = vld [vmem:[#allocation4] sm:$0xff]
    %v161 = vld [vmem:[#allocation4 + $0x8] sm:$0xff]
    %v162 = vld [vmem:[#allocation4 + $0x10] sm:$0xff]
    %v163 = vld [vmem:[#allocation4 + $0x18] sm:$0xff]
    %v164 = vld [vmem:[#allocation4 + $0x20] sm:$0xff]
    %v165 = vld [vmem:[#allocation4 + $0x28] sm:$0xff]
    %v166 = vld [vmem:[#allocation4 + $0x30] sm:$0xff]
    %v167 = vld [vmem:[#allocation4 + $0x38] sm:$0xff]
    %v168 = vld [vmem:[#allocation4 + $0x40] sm:$0xff]
    %v169 = vld [vmem:[#allocation4 + $0x48] sm:$0xff]
    %v170 = vld [vmem:[#allocation4 + $0x50] sm:$0xff]
    %v171 = vld [vmem:[#allocation4 + $0x58] sm:$0xff]
    %v172 = vld [vmem:[#allocation4 + $0x60] sm:$0xff]
    %v173 = vld [vmem:[#allocation4 + $0x68] sm:$0xff]
    %v174 = vld [vmem:[#allocation4 + $0x70] sm:$0xff]
    %v175 = vld [vmem:[#allocation4 + $0x78] sm:$0xff]
    %v176 = vld [vmem:[#allocation4 + $0x80] sm:$0xff]
    %v177 = vld [vmem:[#allocation4 + $0x88] sm:$0xff]
    %v178 = vld [vmem:[#allocation4 + $0x90] sm:$0xff]
    %v179 = vld [vmem:[#allocation4 + $0x98] sm:$0xff]
    %v180 = vld [vmem:[#allocation4 + $0xa0] sm:$0xff]
    %v181 = vld [vmem:[#allocation4 + $0xa8] sm:$0xff]
    %v182 = vld [vmem:[#allocation4 + $0xb0] sm:$0xff]
    %v183 = vld [vmem:[#allocation4 + $0xb8] sm:$0xff]
    %v184 = vld [vmem:[#allocation4 + $0xc0] sm:$0xff]
    %v185 = vld [vmem:[#allocation4 + $0xc8] sm:$0xff]
    %v186 = vld [vmem:[#allocation4 + $0xd0] sm:$0xff]
    %v187 = vld [vmem:[#allocation4 + $0xd8] sm:$0xff]
    %v188 = vld [vmem:[#allocation4 + $0xe0] sm:$0xff]
    %v189 = vld [vmem:[#allocation4 + $0xe8] sm:$0xff]
    %v190 = vld [vmem:[#allocation4 + $0xf0] sm:$0xff]
    %v191 = vld [vmem:[#allocation4 + $0xf8] sm:$0xff]
    %v192 = vld [vmem:[%s4] sm:$0x3]
    %v194 = vlaneseq
    %v195 = vshrl.u32 %v194, 7
    %v196 = vsub.s32 0, %v195
    %v197 = vrot.slane %v192, %v196
    %v198 = vlaneseq
    %v199 = vshrl.u32 %v198, 7
    %v200 = vsub.s32 1, %v199
    %v201 = vrot.slane %v192, %v200
    %v236 = vunpack.c.l.b16 %v160
    %v237 = vunpack.c.h.b16 %v160
    %v238 = vunpack.c.l.b16 %v161
    %v239 = vunpack.c.h.b16 %v161
    %v240 = vunpack.c.l.b16 %v162
    %v241 = vunpack.c.h.b16 %v162
    %v242 = vunpack.c.l.b16 %v163
    %v243 = vunpack.c.h.b16 %v163
    %v244 = vunpack.c.l.b16 %v164
    %v245 = vunpack.c.h.b16 %v164
    %v246 = vunpack.c.l.b16 %v165
    %v247 = vunpack.c.h.b16 %v165
    %v248 = vunpack.c.l.b16 %v166
    %v249 = vunpack.c.h.b16 %v166
    %v250 = vunpack.c.l.b16 %v167
    %v251 = vunpack.c.h.b16 %v167
    %v252 = vunpack.c.l.b16 %v168
    %v253 = vunpack.c.h.b16 %v168
    %v254 = vunpack.c.l.b16 %v169
    %v255 = vunpack.c.h.b16 %v169
    %v256 = vunpack.c.l.b16 %v170
    %v257 = vunpack.c.h.b16 %v170
    %v258 = vunpack.c.l.b16 %v171
    %v259 = vunpack.c.h.b16 %v171
    %v260 = vunpack.c.l.b16 %v172
    %v261 = vunpack.c.h.b16 %v172
    %v262 = vunpack.c.l.b16 %v173
    %v263 = vunpack.c.h.b16 %v173
    %v264 = vunpack.c.l.b16 %v174
    %v265 = vunpack.c.h.b16 %v174
    %v266 = vunpack.c.l.b16 %v175
    %v267 = vunpack.c.h.b16 %v175
    %v268 = vunpack.c.l.b16 %v176
    %v269 = vunpack.c.h.b16 %v176
    %v270 = vunpack.c.l.b16 %v177
    %v271 = vunpack.c.h.b16 %v177
    %v272 = vunpack.c.l.b16 %v178
    %v273 = vunpack.c.h.b16 %v178
    %v274 = vunpack.c.l.b16 %v179
    %v275 = vunpack.c.h.b16 %v179
    %v276 = vunpack.c.l.b16 %v180
    %v277 = vunpack.c.h.b16 %v180
    %v278 = vunpack.c.l.b16 %v181
    %v279 = vunpack.c.h.b16 %v181
    %v280 = vunpack.c.l.b16 %v182
    %v281 = vunpack.c.h.b16 %v182
    %v282 = vunpack.c.l.b16 %v183
    %v283 = vunpack.c.h.b16 %v183
    %v284 = vunpack.c.l.b16 %v184
    %v285 = vunpack.c.h.b16 %v184
    %v286 = vunpack.c.l.b16 %v185
    %v287 = vunpack.c.h.b16 %v185
    %v288 = vunpack.c.l.b16 %v186
    %v289 = vunpack.c.h.b16 %v186
    %v290 = vunpack.c.l.b16 %v187
    %v291 = vunpack.c.h.b16 %v187
    %v292 = vunpack.c.l.b16 %v188
    %v293 = vunpack.c.h.b16 %v188
    %v294 = vunpack.c.l.b16 %v189
    %v295 = vunpack.c.h.b16 %v189
    %v296 = vunpack.c.l.b16 %v190
    %v297 = vunpack.c.h.b16 %v190
    %v298 = vunpack.c.l.b16 %v191
    %v299 = vunpack.c.h.b16 %v191
    %v300 = vpack.c.b16 %v238, %v236
    %v301 = vpack.c.b16 %v239, %v237
    %v302 = vpack.c.b16 %v242, %v240
    %v303 = vpack.c.b16 %v243, %v241
    %v304 = vpack.c.b16 %v246, %v244
    %v305 = vpack.c.b16 %v247, %v245
    %v306 = vpack.c.b16 %v250, %v248
    %v307 = vpack.c.b16 %v251, %v249
    %v308 = vpack.c.b16 %v254, %v252
    %v309 = vpack.c.b16 %v255, %v253
    %v310 = vpack.c.b16 %v258, %v256
    %v311 = vpack.c.b16 %v259, %v257
    %v312 = vpack.c.b16 %v262, %v260
    %v313 = vpack.c.b16 %v263, %v261
    %v314 = vpack.c.b16 %v266, %v264
    %v315 = vpack.c.b16 %v267, %v265
    %v316 = vpack.c.b16 %v270, %v268
    %v317 = vpack.c.b16 %v271, %v269
    %v318 = vpack.c.b16 %v274, %v272
    %v319 = vpack.c.b16 %v275, %v273
    %v320 = vpack.c.b16 %v278, %v276
    %v321 = vpack.c.b16 %v279, %v277
    %v322 = vpack.c.b16 %v282, %v280
    %v323 = vpack.c.b16 %v283, %v281
    %v324 = vpack.c.b16 %v286, %v284
    %v325 = vpack.c.b16 %v287, %v285
    %v326 = vpack.c.b16 %v290, %v288
    %v327 = vpack.c.b16 %v291, %v289
    %v328 = vpack.c.b16 %v294, %v292
    %v329 = vpack.c.b16 %v295, %v293
    %v330 = vpack.c.b16 %v298, %v296
    %v331 = vpack.c.b16 %v299, %v297
    %364 = vmatprep.subr.bf16.mxu0 %v301
    %365 = vmatpush1.bf16.msra.mxu0 %v300
    %366 = vmatprep.subr.bf16.mxu0 %v303
    %367 = vmatpush1.bf16.msra.mxu0 %v302
    %368 = vmatprep.subr.bf16.mxu0 %v305
    %369 = vmatpush1.bf16.msra.mxu0 %v304
    %370 = vmatprep.subr.bf16.mxu0 %v307
    %371 = vmatpush1.bf16.msra.mxu0 %v306
    %372 = vmatprep.subr.bf16.mxu0 %v309
    %373 = vmatpush1.bf16.msra.mxu0 %v308
    %374 = vmatprep.subr.bf16.mxu0 %v311
    %375 = vmatpush1.bf16.msra.mxu0 %v310
    %376 = vmatprep.subr.bf16.mxu0 %v313
    %377 = vmatpush1.bf16.msra.mxu0 %v312
    %378 = vmatprep.subr.bf16.mxu0 %v315
    %379 = vmatpush1.bf16.msra.mxu0 %v314
    %380 = vmatprep.subr.bf16.mxu0 %v317
    %381 = vmatpush1.bf16.msra.mxu0 %v316
    %382 = vmatprep.subr.bf16.mxu0 %v319
    %383 = vmatpush1.bf16.msra.mxu0 %v318
    %384 = vmatprep.subr.bf16.mxu0 %v321
    %385 = vmatpush1.bf16.msra.mxu0 %v320
    %386 = vmatprep.subr.bf16.mxu0 %v323
    %387 = vmatpush1.bf16.msra.mxu0 %v322
    %388 = vmatprep.subr.bf16.mxu0 %v325
    %389 = vmatpush1.bf16.msra.mxu0 %v324
    %390 = vmatprep.subr.bf16.mxu0 %v327
    %391 = vmatpush1.bf16.msra.mxu0 %v326
    %392 = vmatprep.subr.bf16.mxu0 %v329
    %393 = vmatpush1.bf16.msra.mxu0 %v328
    %394 = vmatprep.subr.bf16.mxu0 %v331
    %395 = vmatpush1.bf16.msra.mxu0 %v330
    %396 = vmatprep.mubr.bf16.mxu0 %v159
    %397 = vmatmul.mubr.bf16.gmra.mrb[0].mxu0 %v158
    %v398 = vpop.f32.mrb[0].mxu0
    %v399 = vadd.f32 %v197, %v398
    %v400 = vpop.f32.mrb[0].mxu0
    %v401 = vadd.f32 %v201, %v400
    %v402 = vpop.f32.mrb[0].mxu0
    %v403 = vadd.f32 %v197, %v402
    %v404 = vpop.f32.mrb[0].mxu0
    %v405 = vadd.f32 %v201, %v404
    %406 = vdwg.mxu0
    %v407 = vmax.f32 %v399, 0.0
    %v408 = vmax.f32 %v401, 0.0
    %v409 = vmax.f32 %v403, 0.0
    %v410 = vmax.f32 %v405, 0.0
    %v411 = vpack.c.bf16 %v409, %v407
    %v412 = vpack.c.bf16 %v410, %v408
    %v413 = vld [vmem:[#allocation6] sm:$0xf]
    %v414 = vld [vmem:[#allocation6 + $0x4] sm:$0xf]
    %v415 = vld [vmem:[#allocation6 + $0x8] sm:$0xf]
    %v416 = vld [vmem:[#allocation6 + $0xc] sm:$0xf]
    %v417 = vld [vmem:[#allocation6 + $0x10] sm:$0xf]
    %v418 = vld [vmem:[#allocation6 + $0x14] sm:$0xf]
    %v419 = vld [vmem:[#allocation6 + $0x18] sm:$0xf]
    %v420 = vld [vmem:[#allocation6 + $0x1c] sm:$0xf]
    %v421 = vld [vmem:[#allocation6 + $0x20] sm:$0xf]
    %v422 = vld [vmem:[#allocation6 + $0x24] sm:$0xf]
    %v423 = vld [vmem:[#allocation6 + $0x28] sm:$0xf]
    %v424 = vld [vmem:[#allocation6 + $0x2c] sm:$0xf]
    %v425 = vld [vmem:[#allocation6 + $0x30] sm:$0xf]
    %v426 = vld [vmem:[#allocation6 + $0x34] sm:$0xf]
    %v427 = vld [vmem:[#allocation6 + $0x38] sm:$0xf]
    %v428 = vld [vmem:[#allocation6 + $0x3c] sm:$0xf]
    %v429 = vld [vmem:[#allocation6 + $0x40] sm:$0xf]
    %v430 = vld [vmem:[#allocation6 + $0x44] sm:$0xf]
    %v431 = vld [vmem:[#allocation6 + $0x48] sm:$0xf]
    %v432 = vld [vmem:[#allocation6 + $0x4c] sm:$0xf]
    %v433 = vld [vmem:[#allocation6 + $0x50] sm:$0xf]
    %v434 = vld [vmem:[#allocation6 + $0x54] sm:$0xf]
    %v435 = vld [vmem:[#allocation6 + $0x58] sm:$0xf]
    %v436 = vld [vmem:[#allocation6 + $0x5c] sm:$0xf]
    %v437 = vld [vmem:[#allocation6 + $0x60] sm:$0xf]
    %v438 = vld [vmem:[#allocation6 + $0x64] sm:$0xf]
    %v439 = vld [vmem:[#allocation6 + $0x68] sm:$0xf]
    %v440 = vld [vmem:[#allocation6 + $0x6c] sm:$0xf]
    %v441 = vld [vmem:[#allocation6 + $0x70] sm:$0xf]
    %v442 = vld [vmem:[#allocation6 + $0x74] sm:$0xf]
    %v443 = vld [vmem:[#allocation6 + $0x78] sm:$0xf]
    %v444 = vld [vmem:[#allocation6 + $0x7c] sm:$0xf]
    %v445 = vld [vmem:[%s6] sm:$0x1]
    %v447 = vlaneseq
    %v448 = vshrl.u32 %v447, 7
    %v449 = vsub.s32 0, %v448
    %v450 = vrot.slane %v445, %v449
    %v484 = vunpack.c.l.b16 %v413
    %v485 = vunpack.c.l.b16 %v414
    %v486 = vunpack.c.l.b16 %v415
    %v487 = vunpack.c.l.b16 %v416
    %v488 = vunpack.c.l.b16 %v417
    %v489 = vunpack.c.l.b16 %v418
    %v490 = vunpack.c.l.b16 %v419
    %v491 = vunpack.c.l.b16 %v420
    %v492 = vunpack.c.l.b16 %v421
    %v493 = vunpack.c.l.b16 %v422
    %v494 = vunpack.c.l.b16 %v423
    %v495 = vunpack.c.l.b16 %v424
    %v496 = vunpack.c.l.b16 %v425
    %v497 = vunpack.c.l.b16 %v426
    %v498 = vunpack.c.l.b16 %v427
    %v499 = vunpack.c.l.b16 %v428
    %v500 = vunpack.c.l.b16 %v429
    %v501 = vunpack.c.l.b16 %v430
    %v502 = vunpack.c.l.b16 %v431
    %v503 = vunpack.c.l.b16 %v432
    %v504 = vunpack.c.l.b16 %v433
    %v505 = vunpack.c.l.b16 %v434
    %v506 = vunpack.c.l.b16 %v435
    %v507 = vunpack.c.l.b16 %v436
    %v508 = vunpack.c.l.b16 %v437
    %v509 = vunpack.c.l.b16 %v438
    %v510 = vunpack.c.l.b16 %v439
    %v511 = vunpack.c.l.b16 %v440
    %v512 = vunpack.c.l.b16 %v441
    %v513 = vunpack.c.l.b16 %v442
    %v514 = vunpack.c.l.b16 %v443
    %v515 = vunpack.c.l.b16 %v444
    %v516 = vpack.c.b16 %v485, %v484
    %v517 = vpack.c.b16 %v487, %v486
    %v518 = vpack.c.b16 %v489, %v488
    %v519 = vpack.c.b16 %v491, %v490
    %v520 = vpack.c.b16 %v493, %v492
    %v521 = vpack.c.b16 %v495, %v494
    %v522 = vpack.c.b16 %v497, %v496
    %v523 = vpack.c.b16 %v499, %v498
    %v524 = vpack.c.b16 %v501, %v500
    %v525 = vpack.c.b16 %v503, %v502
    %v526 = vpack.c.b16 %v505, %v504
    %v527 = vpack.c.b16 %v507, %v506
    %v528 = vpack.c.b16 %v509, %v508
    %v529 = vpack.c.b16 %v511, %v510
    %v530 = vpack.c.b16 %v513, %v512
    %v531 = vpack.c.b16 %v515, %v514
    %548 = vmatprep.subr.bf16.mxu0 0
    %549 = vmatpush1.bf16.msra.mxu0 %v516
    %550 = vmatprep.subr.bf16.mxu0 0
    %551 = vmatpush1.bf16.msra.mxu0 %v517
    %552 = vmatprep.subr.bf16.mxu0 0
    %553 = vmatpush1.bf16.msra.mxu0 %v518
    %554 = vmatprep.subr.bf16.mxu0 0
    %555 = vmatpush1.bf16.msra.mxu0 %v519
    %556 = vmatprep.subr.bf16.mxu0 0
    %557 = vmatpush1.bf16.msra.mxu0 %v520
    %558 = vmatprep.subr.bf16.mxu0 0
    %559 = vmatpush1.bf16.msra.mxu0 %v521
    %560 = vmatprep.subr.bf16.mxu0 0
    %561 = vmatpush1.bf16.msra.mxu0 %v522
    %562 = vmatprep.subr.bf16.mxu0 0
    %563 = vmatpush1.bf16.msra.mxu0 %v523
    %564 = vmatprep.subr.bf16.mxu0 0
    %565 = vmatpush1.bf16.msra.mxu0 %v524
    %566 = vmatprep.subr.bf16.mxu0 0
    %567 = vmatpush1.bf16.msra.mxu0 %v525
    %568 = vmatprep.subr.bf16.mxu0 0
    %569 = vmatpush1.bf16.msra.mxu0 %v526
    %570 = vmatprep.subr.bf16.mxu0 0
    %571 = vmatpush1.bf16.msra.mxu0 %v527
    %572 = vmatprep.subr.bf16.mxu0 0
    %573 = vmatpush1.bf16.msra.mxu0 %v528
    %574 = vmatprep.subr.bf16.mxu0 0
    %575 = vmatpush1.bf16.msra.mxu0 %v529
    %576 = vmatprep.subr.bf16.mxu0 0
    %577 = vmatpush1.bf16.msra.mxu0 %v530
    %578 = vmatprep.subr.bf16.mxu0 0
    %579 = vmatpush1.bf16.msra.mxu0 %v531
    %580 = vmatprep.mubr.bf16.mxu0 %v412
    %581 = vmatmul.mubr.bf16.gmra.mrb[0].mxu0 %v411
    %v582 = vpop.f32.mrb[0].mxu0
    %v583 = vadd.f32 %v450, %v582
    %v584 = vpop.f32.mrb[0].mxu0
    %v585 = vpop.f32.mrb[0].mxu0
    %v586 = vadd.f32 %v450, %v585
    %v587 = vpop.f32.mrb[0].mxu0
    %588 = vdwg.mxu0
    %589 = vmax.xlane.f32.xlu0 %v583
    %v590 = vpop.xlane.xlu0 %589
    %591 = vmax.xlane.f32.xlu0 %v586
    %v592 = vpop.xlane.xlu0 %591
    %v593 = vsub.f32 %v583, %v590
    %v594 = vsub.f32 %v586, %v592
    %v595 = vmul.f32 %v593, 1.442695
    %v596 = vpow.pop %v595
    %v597 = vmul.f32 %v594, 1.442695
    %v598 = vpow.pop %v597
    %599 = vadd.xlane.f32.xlu0 %v596
    %v600 = vpop.xlane.xlu0 %599
    %601 = vadd.xlane.f32.xlu0 %v598
    %v602 = vpop.xlane.xlu0 %601
    %v603 = vlog2.pop %v600
    %v604 = vmul.f32 %v603, 0.6931472
    %v605 = vlog2.pop %v602
    %v606 = vmul.f32 %v605, 0.6931472
    %v607 = vsub.f32 %v593, %v604
    %v608 = vsub.f32 %v594, %v606
    %609 = vst [vmem:[%s7] sm:$0xff] %v607
    %610 = vst [vmem:[%s7 + $0x8] sm:$0xff] %v608
    // Predicated region
    $region42: #{_concept_net_forward.1} parent=1 // pred_check
      _
    $region43: #{_concept_net_forward.1} parent=1 // pred_check_branch
      %612 = sbr.rel (0) target = $region45
    $region44: #{_concept_net_forward.1} parent=1 // pred_region
      _
    $region45: #{_concept_net_forward.1} parent=1 // pred_fallthru
      _
    // Predicated region
    $region46: #{_concept_net_forward.1} parent=1 // pred_check
      _
    $region47: #{_concept_net_forward.1} parent=1 // pred_check_branch
      %614 = sbr.rel (0) target = $region49
    $region48: #{_concept_net_forward.1} parent=1 // pred_region
      _
    $region49: #{_concept_net_forward.1} parent=1 // pred_fallthru
      _
    %615 = vsyncpa [#allocation3], 1
    %616 = vsyncpa [#allocation5], 1

</llo_original>
